<compile_context>
chip_gen: v7x
topology: tpu7x:2x2x1
jax: 0.10.0
libtpu: 0.0.40
codegen_flags: <defaults>
</compile_context>

<pallas_src>
import math

import jax
import jax.numpy as jnp
from jax.experimental import pallas as pl
from jax.experimental.pallas import tpu as pltpu

HIDDEN = 32
HEADS = 2
HEAD_DIM = HIDDEN // HEADS
KV_WIDTH = 2 * HIDDEN            # lane-dense [k | v]
OUT_CHANNELS = 1
NEG_INF = -1e30
VMEM_LIMIT = 48 * 1024 * 1024    # fits v7x's 64 MiB physical VMEM with headroom


# ----------------------------- small helpers -----------------------------

def _round_up(x, m):
    return ((x + m - 1) // m) * m


def _gelu_erf(x):
    """Exact erf-GELU (torch default). erf via Abramowitz&Stegun 7.1.26, |err|<1.5e-7,
    built only from ops that lower cleanly in Mosaic (exp, mul, add, where)."""
    z = x * 0.7071067811865476
    neg = z < 0.0
    az = jnp.where(neg, -z, z)
    t = 1.0 / (1.0 + 0.3275911 * az)
    poly = t * (0.254829592 + t * (-0.284496736 + t * (1.421413741 +
               t * (-1.453152027 + t * 1.061405429))))
    erf_abs = 1.0 - poly * jnp.exp(-az * az)
    erf = jnp.where(neg, -erf_abs, erf_abs)
    return 0.5 * x * (1.0 + erf)


# ----------------------------- projection kernel -----------------------------

def _proj_kernel(x_ref, wl_ref, bl_ref, wq_ref, bq_ref, wkv_ref, bkv_ref,
                 h_ref, q_ref, kv_ref):
    """Per row tile: h = relu(x @ Wl + bl); q = h @ Wq + bq; [k|v] = h @ Wkv + bkv."""
    x = x_ref[...]                                               # (T, C) bf16
    h = jnp.dot(x, wl_ref[...], preferred_element_type=jnp.float32) + bl_ref[...]
    h = jnp.maximum(h, 0.0)
    h_ref[...] = h
    hb = h.astype(jnp.bfloat16)
    q = jnp.dot(hb, wq_ref[...], preferred_element_type=jnp.float32) + bq_ref[...]
    q_ref[...] = q.astype(jnp.bfloat16)
    kv = jnp.dot(hb, wkv_ref[...], preferred_element_type=jnp.float32) + bkv_ref[...]
    kv_ref[...] = kv.astype(jnp.bfloat16)


def project(x, wl, bl, wq_q, bq_q, wq_kv, bq_kv, tile_rows=512):
    n, c = x.shape
    tile = min(tile_rows, _round_up(n, 16))
    n_pad = _round_up(n, tile)
    x_p = jnp.pad(x, ((0, n_pad - n), (0, 0))).astype(jnp.bfloat16)

    full = lambda i: (0, 0)
    flops = 2 * n_pad * HIDDEN * (c + HIDDEN + KV_WIDTH)
    bytes_acc = (n_pad * c * 2
                 + n_pad * (HIDDEN * 4 + HIDDEN * 2 + KV_WIDTH * 2)
                 + (c * HIDDEN + HIDDEN * HIDDEN + HIDDEN * KV_WIDTH) * 2)

    h, q, kv = pl.pallas_call(
        _proj_kernel,
        out_shape=(jax.ShapeDtypeStruct((n_pad, HIDDEN), jnp.float32),
                   jax.ShapeDtypeStruct((n_pad, HIDDEN), jnp.bfloat16),
                   jax.ShapeDtypeStruct((n_pad, KV_WIDTH), jnp.bfloat16)),
        grid_spec=pltpu.PrefetchScalarGridSpec(
            num_scalar_prefetch=0,
            grid=(n_pad // tile,),
            in_specs=[pl.BlockSpec((tile, c), lambda i: (i, 0)),
                      pl.BlockSpec((c, HIDDEN), full),
                      pl.BlockSpec((1, HIDDEN), full),
                      pl.BlockSpec((HIDDEN, HIDDEN), full),
                      pl.BlockSpec((1, HIDDEN), full),
                      pl.BlockSpec((HIDDEN, KV_WIDTH), full),
                      pl.BlockSpec((1, KV_WIDTH), full)],
            out_specs=(pl.BlockSpec((tile, HIDDEN), lambda i: (i, 0)),
                       pl.BlockSpec((tile, HIDDEN), lambda i: (i, 0)),
                       pl.BlockSpec((tile, KV_WIDTH), lambda i: (i, 0)))),
        compiler_params=pltpu.CompilerParams(
            dimension_semantics=("parallel",),
            vmem_limit_bytes=VMEM_LIMIT),
        cost_estimate=pl.CostEstimate(flops=int(flops), transcendentals=0,
                                      bytes_accessed=int(bytes_acc)),
    )(x_p, wl, bl, wq_q, bq_q, wq_kv, bq_kv)
    return h[:n], q[:n], kv[:n]


# ----------------------------- flash HGT attention kernel -----------------------------

def _flash_dst_kernel(rel_ids_ref, q_ref, h_ref, kv_ref, wkv_ref, a_ref,
                      aw_ref, ab_ref, o_ref, *scratch):
    """Grid = (Nd tiles [parallel], S tiles [reduction]). Online softmax across the
    concatenated (padded, per-relation) source axis, then fused GELU/a_lin/skip."""
    s_idx = pl.program_id(1)
    m_refs = [scratch[3 * h + 0] for h in range(HEADS)]
    l_refs = [scratch[3 * h + 1] for h in range(HEADS)]
    acc_refs = [scratch[3 * h + 2] for h in range(HEADS)]

    @pl.when(s_idx == 0)
    def _():
        for h in range(HEADS):
            m_refs[h][...] = jnp.full_like(m_refs[h], NEG_INF)
            l_refs[h][...] = jnp.zeros_like(l_refs[h])
            acc_refs[h][...] = jnp.zeros_like(acc_refs[h])

    # per-relation [k|v] block-diag transform; p_rel/sqrt(D) already folded into
    # the k blocks, so no per-score scaling below.
    kvt = jnp.dot(kv_ref[...], wkv_ref[0],
                  preferred_element_type=jnp.float32)            # (TS, 64) f32
    counts = a_ref[...]                                          # (TN, TS) bf16
    bias = jnp.where(counts > 0, 0.0, NEG_INF)                   # shared by both heads
    q = q_ref[...]                                               # (TN, 32) bf16

    for h in range(HEADS):
        q_h = q[:, h * HEAD_DIM:(h + 1) * HEAD_DIM]
        k_h = kvt[:, h * HEAD_DIM:(h + 1) * HEAD_DIM].astype(jnp.bfloat16)
        v_h = kvt[:, HIDDEN + h * HEAD_DIM:
                     HIDDEN + (h + 1) * HEAD_DIM].astype(jnp.bfloat16)
        logits = jax.lax.dot_general(q_h, k_h, (((1,), (1,)), ((), ())),
                                     preferred_element_type=jnp.float32)
        logits = logits + bias
        m_prev = m_refs[h][...]
        m_new = jnp.maximum(m_prev, jnp.max(logits, axis=-1, keepdims=True))
        c = jnp.exp(m_prev - m_new)
        e = jnp.exp(logits - m_new) * counts   # multiplicity-weighted, 0 on non-edges
        l_refs[h][...] = l_refs[h][...] * c + jnp.sum(e, axis=-1, keepdims=True)
        acc_refs[h][...] = acc_refs[h][...] * c + jnp.dot(
            e.astype(jnp.bfloat16), v_h, preferred_element_type=jnp.float32)
        m_refs[h][...] = m_new

    @pl.when(s_idx == pl.num_programs(1) - 1)
    def _():
        outs = []
        for h in range(HEADS):
            l = l_refs[h][...]
            inv = pl.reciprocal(jnp.where(l > 0.0, l, 1.0), approx=True)
            outs.append(acc_refs[h][...] * inv)   # zero-in-degree rows stay 0
        o = jnp.concatenate(outs, axis=1)         # (TN, 32) lane-dense f32
        g = _gelu_erf(o)
        y = jnp.dot(g.astype(jnp.bfloat16), aw_ref[...],
                    preferred_element_type=jnp.float32) + ab_ref[...]
        # sigmoid(skip) is folded into aw/ab; h_ref is pre-scaled by (1 - sigmoid(skip))
        o_ref[...] = y + h_ref[...]


def fused_hgt_dst(q_dst, h_skip, rel_kv, rel_wkv, rel_a, aw, ab,
                  tile_nd_max=256, tile_s_max=512):
    nd = q_dst.shape[0]
    tile_nd = min(tile_nd_max, _round_up(nd, 16))
    nd_pad = _round_up(nd, tile_nd)
    max_ns = max(kv.shape[0] for kv in rel_kv)
    tile_s = min(tile_s_max, _round_up(max_ns, 128))

    # concatenate relations along a padded source axis; every S tile maps to exactly
    # one relation, whose (64,64) transform is picked via scalar-prefetched rel_id.
    kv_segs, a_segs, rel_ids = [], [], []
    for r, (kv, a_mat) in enumerate(zip(rel_kv, rel_a)):
        ns = kv.shape[0]
        seg = _round_up(ns, tile_s)
        kv_segs.append(jnp.pad(kv, ((0, seg - ns), (0, 0))))
        a_segs.append(jnp.pad(a_mat, ((0, nd_pad - nd), (0, seg - ns))))
        rel_ids += [r] * (seg // tile_s)
    kv_all = jnp.concatenate(kv_segs, axis=0)                    # (S, 64) bf16
    a_all = jnp.concatenate(a_segs, axis=1)                      # (Nd_pad, S) bf16
    wkv_all = jnp.stack(rel_wkv, axis=0)                         # (R, 64, 64) bf16
    rel_id = jnp.asarray(rel_ids, jnp.int32)
    s_total = kv_all.shape[0]
    grid = (nd_pad // tile_nd, s_total // tile_s)

    q_p = jnp.pad(q_dst, ((0, nd_pad - nd), (0, 0)))
    h_p = jnp.pad(h_skip, ((0, nd_pad - nd), (0, 0)))

    flops = int(grid[0] * 2 * s_total * KV_WIDTH * KV_WIDTH
                + 4 * HEADS * nd_pad * s_total * HEAD_DIM
                + 2 * nd_pad * HIDDEN * HIDDEN)
    transcend = int(2 * HEADS * nd_pad * s_total)
    bytes_acc = int(grid[0] * s_total * KV_WIDTH * 2
                    + nd_pad * s_total * 2
                    + nd_pad * HIDDEN * (2 + 4 + 4))

    scratch = []
    for _ in range(HEADS):
        scratch += [pltpu.VMEM((tile_nd, 1), jnp.float32),        # m
                    pltpu.VMEM((tile_nd, 1), jnp.float32),        # l
                    pltpu.VMEM((tile_nd, HEAD_DIM), jnp.float32)] # acc

    out = pl.pallas_call(
        _flash_dst_kernel,
        out_shape=jax.ShapeDtypeStruct((nd_pad, HIDDEN), jnp.float32),
        grid_spec=pltpu.PrefetchScalarGridSpec(
            num_scalar_prefetch=1,
            grid=grid,
            in_specs=[
                pl.BlockSpec((tile_nd, HIDDEN), lambda i, s, rel: (i, 0)),   # q
                pl.BlockSpec((tile_nd, HIDDEN), lambda i, s, rel: (i, 0)),   # h_skip
                pl.BlockSpec((tile_s, KV_WIDTH), lambda i, s, rel: (s, 0)),  # kv_all
                pl.BlockSpec((1, KV_WIDTH, KV_WIDTH),
                             lambda i, s, rel: (rel[s], 0, 0)),              # wkv
                pl.BlockSpec((tile_nd, tile_s), lambda i, s, rel: (i, s)),   # A
                pl.BlockSpec((HIDDEN, HIDDEN), lambda i, s, rel: (0, 0)),    # a_lin w
                pl.BlockSpec((1, HIDDEN), lambda i, s, rel: (0, 0)),         # a_lin b
            ],
            out_specs=pl.BlockSpec((tile_nd, HIDDEN), lambda i, s, rel: (i, 0)),
            scratch_shapes=scratch),
        compiler_params=pltpu.CompilerParams(
            dimension_semantics=("parallel", "arbitrary"),
            vmem_limit_bytes=VMEM_LIMIT),
        cost_estimate=pl.CostEstimate(flops=flops, transcendentals=transcend,
                                      bytes_accessed=bytes_acc),
    )(rel_id, q_p, h_p, kv_all, wkv_all, a_all, aw, ab)
    return out[:nd]


# ----------------------------- parameters -----------------------------

def init_params(key, metadata, in_channels_dict):
    node_types, edge_types = metadata
    params = {"lin": {}, "kqv": {}, "a_lin": {}, "skip": {},
              "k_rel": {}, "v_rel": {}, "p_rel": {}}

    def nxt():
        nonlocal key
        key, sub = jax.random.split(key)
        return sub

    for nt in node_types:
        cin = in_channels_dict[nt]
        params["lin"][nt] = {
            "w": jax.random.normal(nxt(), (cin, HIDDEN), jnp.float32) * 0.1,
            "b": jax.random.normal(nxt(), (HIDDEN,), jnp.float32) * 0.1}
        params["kqv"][nt] = {
            "w": jax.random.normal(nxt(), (HIDDEN, 3 * HIDDEN), jnp.float32) * 0.1,
            "b": jax.random.normal(nxt(), (3 * HIDDEN,), jnp.float32) * 0.1}
        params["a_lin"][nt] = {
            "w": jax.random.normal(nxt(), (HIDDEN, HIDDEN), jnp.float32) * 0.1,
            "b": jax.random.normal(nxt(), (HIDDEN,), jnp.float32) * 0.1}
        params["skip"][nt] = jnp.ones((), jnp.float32)          # PyG inits skip to 1
    for et in edge_types:
        params["k_rel"][et] = jax.random.normal(nxt(), (HEADS, HEAD_DIM, HEAD_DIM),
                                                jnp.float32) * 0.1
        params["v_rel"][et] = jax.random.normal(nxt(), (HEADS, HEAD_DIM, HEAD_DIM),
                                                jnp.float32) * 0.1
        params["p_rel"][et] = jnp.ones((HEADS,), jnp.float32)   # PyG inits p_rel to 1
    params["out"] = {
        "w": jax.random.normal(nxt(), (HIDDEN, OUT_CHANNELS), jnp.float32) * 0.1,
        "b": jax.random.normal(nxt(), (OUT_CHANNELS,), jnp.float32) * 0.1}
    return params


# ----------------------------- forward -----------------------------

def native_hetero_gnn_forward(params, x_dict, edge_index_dict, metadata):
    node_types, edge_types = metadata
    scale = 1.0 / math.sqrt(HEAD_DIM)

    # 1+2) per-type Linear+ReLU and (q, [k|v]) projections, gridded over rows.
    h_dict, q_dict, kv_dict = {}, {}, {}
    for nt in node_types:
        wl = params["lin"][nt]["w"].astype(jnp.bfloat16)
        bl = params["lin"][nt]["b"].reshape(1, HIDDEN)
        wkqv, bkqv = params["kqv"][nt]["w"], params["kqv"][nt]["b"]
        # reorder kqv columns [k|q|v] -> separate q and lane-dense [k|v]
        wq_q = wkqv[:, HIDDEN:2 * HIDDEN].astype(jnp.bfloat16)
        bq_q = bkqv[HIDDEN:2 * HIDDEN].reshape(1, HIDDEN)
        wq_kv = jnp.concatenate([wkqv[:, :HIDDEN], wkqv[:, 2 * HIDDEN:]],
                                axis=1).astype(jnp.bfloat16)
        bq_kv = jnp.concatenate([bkqv[:HIDDEN], bkqv[2 * HIDDEN:]]).reshape(1, KV_WIDTH)
        h, q, kv = project(x_dict[nt], wl, bl, wq_q, bq_q, wq_kv, bq_kv)
        h_dict[nt], q_dict[nt], kv_dict[nt] = h, q, kv

    # 3) one flash-style pallas_call per destination type over all incoming relations.
    out_dict = {}
    for dst in node_types:
        rels = [et for et in edge_types if et[2] == dst]
        if not rels:
            continue
        nd = x_dict[dst].shape[0]
        rel_kv, rel_wkv, rel_a = [], [], []
        for et in rels:
            src = et[0]
            ns = x_dict[src].shape[0]
            # combined (64,64) block-diag [k|v] relation transform with p_rel/sqrt(D)
            # folded into the k blocks (removes per-score scaling from the kernel).
            blocks = ([params["k_rel"][et][h] * (params["p_rel"][et][h] * scale)
                       for h in range(HEADS)]
                      + [params["v_rel"][et][h] for h in range(HEADS)])
            w = jnp.zeros((KV_WIDTH, KV_WIDTH), jnp.float32)
            for bidx, blk in enumerate(blocks):
                w = w.at[bidx * HEAD_DIM:(bidx + 1) * HEAD_DIM,
                         bidx * HEAD_DIM:(bidx + 1) * HEAD_DIM].set(blk)
            rel_wkv.append(w.astype(jnp.bfloat16))
            ei = edge_index_dict[et]
            # TODO(synk): replace the dense bf16 multiplicity matrix with CSR edge lists
            # via scalar prefetch for large graphs; dense stays exact at these shapes.
            a_mat = jnp.zeros((nd, ns), jnp.float32).at[ei[1], ei[0]].add(1.0)
            rel_a.append(a_mat.astype(jnp.bfloat16))
            rel_kv.append(kv_dict[src])
        a_skip = jax.nn.sigmoid(params["skip"][dst])
        # fold sigmoid(skip) into a_lin; pre-scale the residual (tiny trace-time glue)
        aw = (a_skip * params["a_lin"][dst]["w"]).astype(jnp.bfloat16)
        ab = (a_skip * params["a_lin"][dst]["b"]).reshape(1, HIDDEN)
        h_skip = (1.0 - a_skip) * h_dict[dst]
        out_dict[dst] = fused_hgt_dst(q_dict[dst], h_skip, rel_kv, rel_wkv, rel_a,
                                      aw, ab)

    # 4) final Linear(32 -> 1) on 'paper': trivial lane-dense XLA op in the wrapper
    # (keeps the kernel output 32-lane dense instead of 1-lane masked stores).
    x = out_dict["paper"]
    return jnp.dot(x, params["out"]["w"]) + params["out"]["b"]


# ----------------------------- driver -----------------------------

if __name__ == "__main__":
    key = jax.random.PRNGKey(0)

    node_types = ["paper", "author"]
    edge_types = [("paper", "to", "paper"),
                  ("paper", "to", "author"),
                  ("author", "to", "paper")]
    metadata = (node_types, edge_types)
    num_nodes = {"paper": 8, "author": 10}
    in_channels = {"paper": 16, "author": 8}

    key, kp, ka = jax.random.split(key, 3)
    x_dict = {"paper": jax.random.normal(kp, (8, 16), jnp.float32),
              "author": jax.random.normal(ka, (10, 8), jnp.float32)}

    edge_index_dict = {}
    num_edges = 10
    for et in edge_types:
        key, ks, kd = jax.random.split(key, 3)
        src = jax.random.randint(ks, (num_edges,), 0, num_nodes[et[0]], jnp.int32)
        dst = jax.random.randint(kd, (num_edges,), 0, num_nodes[et[2]], jnp.int32)
        edge_index_dict[et] = jnp.stack([src, dst], axis=0)

    key, kparams = jax.random.split(key)
    params = init_params(kparams, metadata, in_channels)

    out = native_hetero_gnn_forward(params, x_dict, edge_index_dict, metadata)
    out = jax.block_until_ready(out)
    assert out.shape == (num_nodes["paper"], OUT_CHANNELS), out.shape
    assert bool(jnp.all(jnp.isfinite(out)))
    print("KERNEL_OK")
</pallas_src>

<mosaic_0001>
module attributes {stable_mosaic.version = 11 : i64} {
  func.func @_proj_kernel(%arg0: i32, %arg1: memref<16x16xbf16, #tpu.memory_space<vmem>>, %arg2: memref<16x32xbf16, #tpu.memory_space<vmem>>, %arg3: memref<1x32xf32, #tpu.memory_space<vmem>>, %arg4: memref<32x32xbf16, #tpu.memory_space<vmem>>, %arg5: memref<1x32xf32, #tpu.memory_space<vmem>>, %arg6: memref<32x64xbf16, #tpu.memory_space<vmem>>, %arg7: memref<1x64xf32, #tpu.memory_space<vmem>>, %arg8: memref<16x32xf32, #tpu.memory_space<vmem>>, %arg9: memref<16x32xbf16, #tpu.memory_space<vmem>>, %arg10: memref<16x64xbf16, #tpu.memory_space<vmem>>) attributes {dimension_semantics = [#tpu.dimension_semantics<parallel>], iteration_bounds = array<i64: 1>, scalar_prefetch = 0 : i64, scratch_operands = 0 : i64, tpu.core_type = #tpu.core_type<tc>, window_params = [{transform_indices = @transform_0, window_bounds = array<i64: 16, 16>}, {pipeline_mode = #tpu.pipeline_mode<synchronous>, transform_indices = @transform_1, window_bounds = array<i64: 16, 32>}, {pipeline_mode = #tpu.pipeline_mode<synchronous>, transform_indices = @transform_2, window_bounds = array<i64: 1, 32>}, {pipeline_mode = #tpu.pipeline_mode<synchronous>, transform_indices = @transform_3, window_bounds = array<i64: 32, 32>}, {pipeline_mode = #tpu.pipeline_mode<synchronous>, transform_indices = @transform_4, window_bounds = array<i64: 1, 32>}, {pipeline_mode = #tpu.pipeline_mode<synchronous>, transform_indices = @transform_5, window_bounds = array<i64: 32, 64>}, {pipeline_mode = #tpu.pipeline_mode<synchronous>, transform_indices = @transform_6, window_bounds = array<i64: 1, 64>}, {transform_indices = @transform_7, window_bounds = array<i64: 16, 32>}, {transform_indices = @transform_8, window_bounds = array<i64: 16, 32>}, {transform_indices = @transform_9, window_bounds = array<i64: 16, 64>}]} {
    %c0 = arith.constant 0 : index
    %c0_0 = arith.constant 0 : index
    %0 = vector.load %arg1[%c0, %c0_0] : memref<16x16xbf16, #tpu.memory_space<vmem>>, vector<16x16xbf16>
    %c0_1 = arith.constant 0 : index
    %c0_2 = arith.constant 0 : index
    %1 = vector.load %arg2[%c0_1, %c0_2] : memref<16x32xbf16, #tpu.memory_space<vmem>>, vector<16x32xbf16>
    %cst = arith.constant dense<0.000000e+00> : vector<16x32xf32>
    %2 = tpu.matmul %0, %1, %cst {dimension_numbers = #tpu.dot_dimension_numbers<[1], [0], [0], [1], [0, 0, 1, 1], [], []>} : vector<16x16xbf16>, vector<16x32xbf16>, vector<16x32xf32> -> vector<16x32xf32>
    %c0_3 = arith.constant 0 : index
    %c0_4 = arith.constant 0 : index
    %3 = vector.load %arg3[%c0_3, %c0_4] : memref<1x32xf32, #tpu.memory_space<vmem>>, vector<1x32xf32>
    %4 = vector.broadcast %3 : vector<1x32xf32> to vector<16x32xf32>
    %5 = arith.addf %2, %4 : vector<16x32xf32>
    %cst_5 = arith.constant 0.000000e+00 : f32
    %6 = vector.broadcast %cst_5 : f32 to vector<16x32xf32>
    %7 = arith.maximumf %5, %6 : vector<16x32xf32>
    %c0_6 = arith.constant 0 : index
    %c0_7 = arith.constant 0 : index
    %8 = vector.load %arg8[%c0_6, %c0_7] : memref<16x32xf32, #tpu.memory_space<vmem>>, vector<16x32xf32>
    tpu.vector_store %arg8[%c0_6, %c0_7], %7 {strides = array<i32>} : memref<16x32xf32, #tpu.memory_space<vmem>>, vector<16x32xf32>,
    %9 = arith.truncf %7 : vector<16x32xf32> to vector<16x32xbf16>
    %c0_8 = arith.constant 0 : index
    %c0_9 = arith.constant 0 : index
    %10 = vector.load %arg4[%c0_8, %c0_9] : memref<32x32xbf16, #tpu.memory_space<vmem>>, vector<32x32xbf16>
    %cst_10 = arith.constant dense<0.000000e+00> : vector<16x32xf32>
    %11 = tpu.matmul %9, %10, %cst_10 {dimension_numbers = #tpu.dot_dimension_numbers<[1], [0], [0], [1], [0, 0, 1, 1], [], []>} : vector<16x32xbf16>, vector<32x32xbf16>, vector<16x32xf32> -> vector<16x32xf32>
    %c0_11 = arith.constant 0 : index
    %c0_12 = arith.constant 0 : index
    %12 = vector.load %arg5[%c0_11, %c0_12] : memref<1x32xf32, #tpu.memory_space<vmem>>, vector<1x32xf32>
    %13 = vector.broadcast %12 : vector<1x32xf32> to vector<16x32xf32>
    %14 = arith.addf %11, %13 : vector<16x32xf32>
    %15 = arith.truncf %14 : vector<16x32xf32> to vector<16x32xbf16>
    %c0_13 = arith.constant 0 : index
    %c0_14 = arith.constant 0 : index
    %16 = vector.load %arg9[%c0_13, %c0_14] : memref<16x32xbf16, #tpu.memory_space<vmem>>, vector<16x32xbf16>
    tpu.vector_store %arg9[%c0_13, %c0_14], %15 {strides = array<i32>} : memref<16x32xbf16, #tpu.memory_space<vmem>>, vector<16x32xbf16>,
    %c0_15 = arith.constant 0 : index
    %c0_16 = arith.constant 0 : index
    %17 = vector.load %arg6[%c0_15, %c0_16] : memref<32x64xbf16, #tpu.memory_space<vmem>>, vector<32x64xbf16>
    %cst_17 = arith.constant dense<0.000000e+00> : vector<16x64xf32>
    %18 = tpu.matmul %9, %17, %cst_17 {dimension_numbers = #tpu.dot_dimension_numbers<[1], [0], [0], [1], [0, 0, 1, 1], [], []>} : vector<16x32xbf16>, vector<32x64xbf16>, vector<16x64xf32> -> vector<16x64xf32>
    %c0_18 = arith.constant 0 : index
    %c0_19 = arith.constant 0 : index
    %19 = vector.load %arg7[%c0_18, %c0_19] : memref<1x64xf32, #tpu.memory_space<vmem>>, vector<1x64xf32>
    %20 = vector.broadcast %19 : vector<1x64xf32> to vector<16x64xf32>
    %21 = arith.addf %18, %20 : vector<16x64xf32>
    %22 = arith.truncf %21 : vector<16x64xf32> to vector<16x64xbf16>
    %c0_20 = arith.constant 0 : index
    %c0_21 = arith.constant 0 : index
    %23 = vector.load %arg10[%c0_20, %c0_21] : memref<16x64xbf16, #tpu.memory_space<vmem>>, vector<16x64xbf16>
    tpu.vector_store %arg10[%c0_20, %c0_21], %22 {strides = array<i32>} : memref<16x64xbf16, #tpu.memory_space<vmem>>, vector<16x64xbf16>,
    return
  }
  func.func @transform_0(%arg0: i32) -> (i32, i32) {
    %c0_i32 = arith.constant 0 : i32
    %c0_i32_0 = arith.constant 0 : i32
    return %arg0, %c0_i32 : i32, i32
  }
  func.func @transform_1(%arg0: i32) -> (i32, i32) {
    %c0_i32 = arith.constant 0 : i32
    %c0_i32_0 = arith.constant 0 : i32
    %c0_i32_1 = arith.constant 0 : i32
    return %c0_i32, %c0_i32_0 : i32, i32
  }
  func.func @transform_2(%arg0: i32) -> (i32, i32) {
    %c0_i32 = arith.constant 0 : i32
    %c0_i32_0 = arith.constant 0 : i32
    %c0_i32_1 = arith.constant 0 : i32
    return %c0_i32, %c0_i32_0 : i32, i32
  }
  func.func @transform_3(%arg0: i32) -> (i32, i32) {
    %c0_i32 = arith.constant 0 : i32
    %c0_i32_0 = arith.constant 0 : i32
    %c0_i32_1 = arith.constant 0 : i32
    return %c0_i32, %c0_i32_0 : i32, i32
  }
  func.func @transform_4(%arg0: i32) -> (i32, i32) {
    %c0_i32 = arith.constant 0 : i32
    %c0_i32_0 = arith.constant 0 : i32
    %c0_i32_1 = arith.constant 0 : i32
    return %c0_i32, %c0_i32_0 : i32, i32
  }
  func.func @transform_5(%arg0: i32) -> (i32, i32) {
    %c0_i32 = arith.constant 0 : i32
    %c0_i32_0 = arith.constant 0 : i32
    %c0_i32_1 = arith.constant 0 : i32
    return %c0_i32, %c0_i32_0 : i32, i32
  }
  func.func @transform_6(%arg0: i32) -> (i32, i32) {
    %c0_i32 = arith.constant 0 : i32
    %c0_i32_0 = arith.constant 0 : i32
    %c0_i32_1 = arith.constant 0 : i32
    return %c0_i32, %c0_i32_0 : i32, i32
  }
  func.func @transform_7(%arg0: i32) -> (i32, i32) {
    %c0_i32 = arith.constant 0 : i32
    %c0_i32_0 = arith.constant 0 : i32
    return %arg0, %c0_i32 : i32, i32
  }
  func.func @transform_8(%arg0: i32) -> (i32, i32) {
    %c0_i32 = arith.constant 0 : i32
    %c0_i32_0 = arith.constant 0 : i32
    return %arg0, %c0_i32 : i32, i32
  }
  func.func @transform_9(%arg0: i32) -> (i32, i32) {
    %c0_i32 = arith.constant 0 : i32
    %c0_i32_0 = arith.constant 0 : i32
    return %arg0, %c0_i32 : i32, i32
  }
}

</mosaic_0001>

<llo_original>
// kernel: tpu_custom_call.1
$region0: #{tpu_custom_call.1}
  #allocation0 [shape = 'u32[]', space=smem, size = 0x4, offset = 0x4, fixed_abs, tag = 'smem constant byte address 0x4 - core index']
  #allocation1 [shape = 'u32[144,128]{1,0:T(1,128)}', space=vmem, size = 0x12000, scoped, tag = 'internal scratch']
  %s0 = inlined_call_operand.hbm [shape: bf16[16,16], index: 0, kind: input, shape index: {}]
  %s1 = inlined_call_operand.hbm [shape: bf16[16,32], index: 1, kind: input, shape index: {}]
  %s2 = inlined_call_operand.vmem [shape: f32[1,32], index: 2, kind: input, shape index: {}]
  %s3 = inlined_call_operand.hbm [shape: bf16[32,32], index: 3, kind: input, shape index: {}]
  %s4 = inlined_call_operand.vmem [shape: f32[1,32], index: 4, kind: input, shape index: {}]
  %s5 = inlined_call_operand.vmem [shape: bf16[32,64], index: 5, kind: input, shape index: {}]
  %s6 = inlined_call_operand.vmem [shape: f32[1,64], index: 6, kind: input, shape index: {}]
  %s7 = inlined_call_operand.hbm [shape: f32[16,32], index: 7, kind: output, shape index: {0}]
  %s8 = inlined_call_operand.hbm [shape: bf16[16,32], index: 8, kind: output, shape index: {1}]
  %s9 = inlined_call_operand.hbm [shape: bf16[16,64], index: 9, kind: output, shape index: {2}]
  %10 = xla_tuple %s7, %s8, %s9
  %s11 = sld [smem:[#allocation0]]
  $region66: #{tpu_custom_call.1} parent=0
    _
  %s13 = ssub.s32 1, %s11
  %s14 = scalar_select 0, %s13, %s11
  $region1: #{tpu_custom_call.1} parent=0
    #allocation2 [shape = 'u8[4096]{0}', space=vmem, size = 0x1000, scoped, tag = 'input window, operand 0, single buffered']
    #allocation3 [shape = 's32[1]{0}', space=sflag, size = 0x4, scoped, tag = 'scoped memory for tpu_custom_call.1']
    #allocation4 [shape = 's32[1]{0}', space=sflag, size = 0x4, scoped, tag = 'scoped memory for tpu_custom_call.1']
    #allocation5 [shape = 'u8[4096]{0}', space=vmem, size = 0x1000, scoped, tag = 'input window, operand 1, single buffered']
    #allocation6 [shape = 's32[1]{0}', space=sflag, size = 0x4, scoped, tag = 'scoped memory for tpu_custom_call.1']
    #allocation7 [shape = 'u8[8192]{0}', space=vmem, size = 0x2000, scoped, tag = 'input window, operand 3, single buffered']
    #allocation8 [shape = 'u8[8192]{0}', space=vmem, size = 0x2000, scoped, tag = 'output window, operand 0, single buffered']
    #allocation9 [shape = 'u8[4096]{0}', space=vmem, size = 0x1000, scoped, tag = 'output window, operand 1, single buffered']
    #allocation10 [shape = 's32[1]{0}', space=sflag, size = 0x4, scoped, tag = 'scoped memory for tpu_custom_call.1']
    #allocation11 [shape = 'u8[4096]{0}', space=vmem, size = 0x1000, scoped, tag = 'output window, operand 2, single buffered']
    %15 = vsyncpa [#allocation3], 0
    %16 = vsyncpa [#allocation6], 0
    %17 = vsyncpa [#allocation4], 0
    %18 = vsyncpa [#allocation10], 0
    // Predicated region
    $region2: #{tpu_custom_call.1} parent=1 // pred_check
      _
    $region3: #{tpu_custom_call.1} parent=1 // pred_check_branch
      %20 = sbr.rel (0) target = $region5
    $region4: #{tpu_custom_call.1} parent=1 // pred_region
      %s22 = ssub.s32 128, 128
      %23 = vsyncadd [#allocation3], %s22
      %s24 = sshll.u32 [#allocation2], 4
      %s25 = int_to_ptr.vmem [resolvable:$true] %s24
      %30 = dma.hbm_to_vmem [thread:$0]  %s0, 128, %s25, [#allocation3], 64, 64, 4
    $region5: #{tpu_custom_call.1} parent=1 // pred_fallthru
      _
    // Predicated region
    $region6: #{tpu_custom_call.1} parent=1 // pred_check
      _
    $region7: #{tpu_custom_call.1} parent=1 // pred_check_branch
      %32 = sbr.rel (0) target = $region9
    $region8: #{tpu_custom_call.1} parent=1 // pred_region
      %s34 = ssub.s32 128, 128
      %35 = vsyncadd [#allocation6], %s34
      %s36 = sshll.u32 [#allocation5], 4
      %s37 = int_to_ptr.vmem [resolvable:$true] %s36
      %42 = dma.hbm_to_vmem [thread:$0]  %s1, 128, %s37, [#allocation6], 64, 64, 4
    $region9: #{tpu_custom_call.1} parent=1 // pred_fallthru
      _
    // Predicated region
    $region10: #{tpu_custom_call.1} parent=1 // pred_check
      _
    $region11: #{tpu_custom_call.1} parent=1 // pred_check_branch
      %44 = sbr.rel (0) target = $region13
    $region12: #{tpu_custom_call.1} parent=1 // pred_region
      _
    $region13: #{tpu_custom_call.1} parent=1 // pred_fallthru
      _
    // Predicated region
    $region14: #{tpu_custom_call.1} parent=1 // pred_check
      _
    $region15: #{tpu_custom_call.1} parent=1 // pred_check_branch
      %46 = sbr.rel (0) target = $region17
    $region16: #{tpu_custom_call.1} parent=1 // pred_region
      %s48 = ssub.s32 256, 256
      %49 = vsyncadd [#allocation6], %s48
      %s50 = sshll.u32 [#allocation7], 4
      %s51 = int_to_ptr.vmem [resolvable:$true] %s50
      %56 = dma.hbm_to_vmem [thread:$0]  %s3, 256, %s51, [#allocation6], 64, 64, 4
    $region17: #{tpu_custom_call.1} parent=1 // pred_fallthru
      _
    // Predicated region
    $region18: #{tpu_custom_call.1} parent=1 // pred_check
      _
    $region19: #{tpu_custom_call.1} parent=1 // pred_check_branch
      %58 = sbr.rel (0) target = $region21
    $region20: #{tpu_custom_call.1} parent=1 // pred_region
      _
    $region21: #{tpu_custom_call.1} parent=1 // pred_fallthru
      _
    // Predicated region
    $region22: #{tpu_custom_call.1} parent=1 // pred_check
      _
    $region23: #{tpu_custom_call.1} parent=1 // pred_check_branch
      %60 = sbr.rel (0) target = $region25
    $region24: #{tpu_custom_call.1} parent=1 // pred_region
      _
    $region25: #{tpu_custom_call.1} parent=1 // pred_fallthru
      _
    // Predicated region
    $region26: #{tpu_custom_call.1} parent=1 // pred_check
      _
    $region27: #{tpu_custom_call.1} parent=1 // pred_check_branch
      %62 = sbr.rel (0) target = $region29
    $region28: #{tpu_custom_call.1} parent=1 // pred_region
      _
    $region29: #{tpu_custom_call.1} parent=1 // pred_fallthru
      _
    // Predicated region
    $region30: #{tpu_custom_call.1} parent=1 // pred_check
      _
    $region31: #{tpu_custom_call.1} parent=1 // pred_check_branch
      %64 = sbr.rel (0) target = $region33
    $region32: #{tpu_custom_call.1} parent=1 // pred_region
      %65 = dma.done [#allocation3], 128
    $region33: #{tpu_custom_call.1} parent=1 // pred_fallthru
      _
    // Predicated region
    $region34: #{tpu_custom_call.1} parent=1 // pred_check
      _
    $region35: #{tpu_custom_call.1} parent=1 // pred_check_branch
      %67 = sbr.rel (0) target = $region37
    $region36: #{tpu_custom_call.1} parent=1 // pred_region
      %68 = dma.done [#allocation6], 128
    $region37: #{tpu_custom_call.1} parent=1 // pred_fallthru
      _
    // Predicated region
    $region38: #{tpu_custom_call.1} parent=1 // pred_check
      _
    $region39: #{tpu_custom_call.1} parent=1 // pred_check_branch
      %70 = sbr.rel (0) target = $region41
    $region40: #{tpu_custom_call.1} parent=1 // pred_region
      %71 = dma.done [#allocation6], 256
    $region41: #{tpu_custom_call.1} parent=1 // pred_fallthru
      _
    %v73 = vld [vmem:[#allocation2] sm:$0xf]
    %v74 = vld [vmem:[#allocation2 + $0x4] sm:$0xf]
    %v75 = vld [vmem:[#allocation5] sm:$0xf]
    %v76 = vld [vmem:[#allocation5 + $0x4] sm:$0xf]
    %v77 = vld [vmem:[%s2] sm:$0x1]
    %v79 = vlaneseq
    %v80 = vshrl.u32 %v79, 7
    %v81 = vsub.s32 0, %v80
    %v82 = vrot.slane %v77, %v81
    %v86 = vunpack.c.l.b16 %v73
    %v87 = vunpack.c.l.b16 %v74
    %v88 = vpack.c.b16 %v87, %v86
    %v91 = vunpack.c.l.b16 %v75
    %v92 = vunpack.c.l.b16 %v76
    %v93 = vpack.c.b16 %v92, %v91
    %vm95 = vcmask 130048
    %v97 = vsel %vm95, %v88, 0
    %99 = vmatprep.subr.bf16.mxu0 0
    %100 = vmatpush1.bf16.msra.mxu0 %v93
    %101 = vmatprep.subr.bf16.mxu0 0
    %102 = vmatpush1.bf16.msra.mxu0 0
    %103 = vmatprep.subr.bf16.mxu0 0
    %104 = vmatpush1.bf16.msra.mxu0 0
    %105 = vmatprep.subr.bf16.mxu0 0
    %106 = vmatpush1.bf16.msra.mxu0 0
    %107 = vmatprep.subr.bf16.mxu0 0
    %108 = vmatpush1.bf16.msra.mxu0 0
    %109 = vmatprep.subr.bf16.mxu0 0
    %110 = vmatpush1.bf16.msra.mxu0 0
    %111 = vmatprep.subr.bf16.mxu0 0
    %112 = vmatpush1.bf16.msra.mxu0 0
    %113 = vmatprep.subr.bf16.mxu0 0
    %114 = vmatpush1.bf16.msra.mxu0 0
    %115 = vmatprep.subr.bf16.mxu0 0
    %116 = vmatpush1.bf16.msra.mxu0 0
    %117 = vmatprep.subr.bf16.mxu0 0
    %118 = vmatpush1.bf16.msra.mxu0 0
    %119 = vmatprep.subr.bf16.mxu0 0
    %120 = vmatpush1.bf16.msra.mxu0 0
    %121 = vmatprep.subr.bf16.mxu0 0
    %122 = vmatpush1.bf16.msra.mxu0 0
    %123 = vmatprep.subr.bf16.mxu0 0
    %124 = vmatpush1.bf16.msra.mxu0 0
    %125 = vmatprep.subr.bf16.mxu0 0
    %126 = vmatpush1.bf16.msra.mxu0 0
    %127 = vmatprep.subr.bf16.mxu0 0
    %128 = vmatpush1.bf16.msra.mxu0 0
    %129 = vmatprep.subr.bf16.mxu0 0
    %130 = vmatpush1.bf16.msra.mxu0 0
    %131 = vmatprep.mubr.bf16.mxu0 0
    %132 = vmatmul.mubr.bf16.gmra.mrb[0].mxu0 %v97
    %v133 = vpop.f32.mrb[0].mxu0
    %v134 = vadd.f32 %v82, %v133
    %v135 = vpop.f32.mrb[0].mxu0
    %v136 = vpop.f32.mrb[0].mxu0
    %v137 = vadd.f32 %v82, %v136
    %v138 = vpop.f32.mrb[0].mxu0
    %139 = vdwg.mxu0
    %v140 = vmax.f32 %v134, 0.0
    %v141 = vmax.f32 %v137, 0.0
    %vm142 = vcmask 261120
    %143 = vst.msk [vmem:[#allocation8] sm:$0xff] %vm142, %v140
    %144 = vst.msk [vmem:[#allocation8 + $0x8] sm:$0xff] %vm142, %v141
    %v145 = vpack.c.bf16 %v141, %v140
    %v146 = vld [vmem:[#allocation7] sm:$0xf]
    %v147 = vld [vmem:[#allocation7 + $0x4] sm:$0xf]
    %v148 = vld [vmem:[#allocation7 + $0x8] sm:$0xf]
    %v149 = vld [vmem:[#allocation7 + $0xc] sm:$0xf]
    %v150 = vld [vmem:[%s4] sm:$0x1]
    %v152 = vlaneseq
    %v153 = vshrl.u32 %v152, 7
    %v154 = vsub.s32 0, %v153
    %v155 = vrot.slane %v150, %v154
    %v161 = vunpack.c.l.b16 %v146
    %v162 = vunpack.c.l.b16 %v147
    %v163 = vunpack.c.l.b16 %v148
    %v164 = vunpack.c.l.b16 %v149
    %v165 = vpack.c.b16 %v162, %v161
    %v166 = vpack.c.b16 %v164, %v163
    %v170 = vsel %vm142, %v145, 0
    %172 = vmatprep.subr.bf16.mxu0 0
    %173 = vmatpush1.bf16.msra.mxu0 %v165
    %174 = vmatprep.subr.bf16.mxu0 0
    %175 = vmatpush1.bf16.msra.mxu0 %v166
    %176 = vmatprep.subr.bf16.mxu0 0
    %177 = vmatpush1.bf16.msra.mxu0 0
    %178 = vmatprep.subr.bf16.mxu0 0
    %179 = vmatpush1.bf16.msra.mxu0 0
    %180 = vmatprep.subr.bf16.mxu0 0
    %181 = vmatpush1.bf16.msra.mxu0 0
    %182 = vmatprep.subr.bf16.mxu0 0
    %183 = vmatpush1.bf16.msra.mxu0 0
    %184 = vmatprep.subr.bf16.mxu0 0
    %185 = vmatpush1.bf16.msra.mxu0 0
    %186 = vmatprep.subr.bf16.mxu0 0
    %187 = vmatpush1.bf16.msra.mxu0 0
    %188 = vmatprep.subr.bf16.mxu0 0
    %189 = vmatpush1.bf16.msra.mxu0 0
    %190 = vmatprep.subr.bf16.mxu0 0
    %191 = vmatpush1.bf16.msra.mxu0 0
    %192 = vmatprep.subr.bf16.mxu0 0
    %193 = vmatpush1.bf16.msra.mxu0 0
    %194 = vmatprep.subr.bf16.mxu0 0
    %195 = vmatpush1.bf16.msra.mxu0 0
    %196 = vmatprep.subr.bf16.mxu0 0
    %197 = vmatpush1.bf16.msra.mxu0 0
    %198 = vmatprep.subr.bf16.mxu0 0
    %199 = vmatpush1.bf16.msra.mxu0 0
    %200 = vmatprep.subr.bf16.mxu0 0
    %201 = vmatpush1.bf16.msra.mxu0 0
    %202 = vmatprep.subr.bf16.mxu0 0
    %203 = vmatpush1.bf16.msra.mxu0 0
    %204 = vmatprep.mubr.bf16.mxu0 0
    %205 = vmatmul.mubr.bf16.gmra.mrb[0].mxu0 %v170
    %v206 = vpop.f32.mrb[0].mxu0
    %v207 = vadd.f32 %v155, %v206
    %v208 = vpop.f32.mrb[0].mxu0
    %v209 = vpop.f32.mrb[0].mxu0
    %v210 = vadd.f32 %v155, %v209
    %v211 = vpop.f32.mrb[0].mxu0
    %212 = vdwg.mxu0
    %v213 = vpack.c.bf16 %v210, %v207
    %v215 = vunpack.c.l.b16 %v213
    %v216 = vunpack.c.h.b16 %v213
    %v217 = vpack.c.b16 %v215, %v215
    %v218 = vpack.c.b16 %v216, %v216
    %vm221 = vcmask 257024
    %222 = vst.msk [vmem:[#allocation9] sm:$0xf] %vm221, %v217
    %223 = vst.msk [vmem:[#allocation9 + $0x4] sm:$0xf] %vm221, %v218
    %v224 = vld [vmem:[%s5] sm:$0xf]
    %v225 = vld [vmem:[%s5 + $0x4] sm:$0xf]
    %v226 = vld [vmem:[%s5 + $0x8] sm:$0xf]
    %v227 = vld [vmem:[%s5 + $0xc] sm:$0xf]
    %v228 = vld [vmem:[%s6] sm:$0x1]
    %v230 = vlaneseq
    %v231 = vshrl.u32 %v230, 7
    %v232 = vsub.s32 0, %v231
    %v233 = vrot.slane %v228, %v232
    %v239 = vunpack.c.l.b16 %v224
    %v240 = vunpack.c.l.b16 %v225
    %v241 = vunpack.c.l.b16 %v226
    %v242 = vunpack.c.l.b16 %v227
    %v243 = vpack.c.b16 %v240, %v239
    %v244 = vpack.c.b16 %v242, %v241
    %247 = vmatprep.subr.bf16.mxu0 0
    %248 = vmatpush1.bf16.msra.mxu0 %v243
    %249 = vmatprep.subr.bf16.mxu0 0
    %250 = vmatpush1.bf16.msra.mxu0 %v244
    %251 = vmatprep.subr.bf16.mxu0 0
    %252 = vmatpush1.bf16.msra.mxu0 0
    %253 = vmatprep.subr.bf16.mxu0 0
    %254 = vmatpush1.bf16.msra.mxu0 0
    %255 = vmatprep.subr.bf16.mxu0 0
    %256 = vmatpush1.bf16.msra.mxu0 0
    %257 = vmatprep.subr.bf16.mxu0 0
    %258 = vmatpush1.bf16.msra.mxu0 0
    %259 = vmatprep.subr.bf16.mxu0 0
    %260 = vmatpush1.bf16.msra.mxu0 0
    %261 = vmatprep.subr.bf16.mxu0 0
    %262 = vmatpush1.bf16.msra.mxu0 0
    %263 = vmatprep.subr.bf16.mxu0 0
    %264 = vmatpush1.bf16.msra.mxu0 0
    %265 = vmatprep.subr.bf16.mxu0 0
    %266 = vmatpush1.bf16.msra.mxu0 0
    %267 = vmatprep.subr.bf16.mxu0 0
    %268 = vmatpush1.bf16.msra.mxu0 0
    %269 = vmatprep.subr.bf16.mxu0 0
    %270 = vmatpush1.bf16.msra.mxu0 0
    %271 = vmatprep.subr.bf16.mxu0 0
    %272 = vmatpush1.bf16.msra.mxu0 0
    %273 = vmatprep.subr.bf16.mxu0 0
    %274 = vmatpush1.bf16.msra.mxu0 0
    %275 = vmatprep.subr.bf16.mxu0 0
    %276 = vmatpush1.bf16.msra.mxu0 0
    %277 = vmatprep.subr.bf16.mxu0 0
    %278 = vmatpush1.bf16.msra.mxu0 0
    %279 = vmatprep.mubr.bf16.mxu0 0
    %280 = vmatmul.mubr.bf16.gmra.mrb[0].mxu0 %v170
    %v281 = vpop.f32.mrb[0].mxu0
    %v282 = vadd.f32 %v233, %v281
    %v283 = vpop.f32.mrb[0].mxu0
    %v284 = vpop.f32.mrb[0].mxu0
    %v285 = vadd.f32 %v233, %v284
    %v286 = vpop.f32.mrb[0].mxu0
    %287 = vdwg.mxu0
    %v288 = vpack.c.bf16 %v285, %v282
    %v290 = vunpack.c.l.b16 %v288
    %v291 = vunpack.c.h.b16 %v288
    %v292 = vpack.c.b16 %v290, %v290
    %v293 = vpack.c.b16 %v291, %v291
    %vm296 = vcmask 519168
    %297 = vst.msk [vmem:[#allocation11] sm:$0xf] %vm296, %v292
    %298 = vst.msk [vmem:[#allocation11 + $0x4] sm:$0xf] %vm296, %v293
    // Predicated region
    $region42: #{tpu_custom_call.1} parent=1 // pred_check
      _
    $region43: #{tpu_custom_call.1} parent=1 // pred_check_branch
      %300 = sbr.rel (0) target = $region45
    $region44: #{tpu_custom_call.1} parent=1 // pred_region
      %s302 = ssub.s32 256, 256
      %303 = vsyncadd [#allocation4], %s302
      %s304 = sshll.u32 [#allocation8], 4
      %s305 = int_to_ptr.vmem [resolvable:$true] %s304
      %310 = dma.vmem_to_hbm [thread:$0]  %s305, 256, %s7, [#allocation4], 128, 128, 8
    $region45: #{tpu_custom_call.1} parent=1 // pred_fallthru
      _
    // Predicated region
    $region46: #{tpu_custom_call.1} parent=1 // pred_check
      _
    $region47: #{tpu_custom_call.1} parent=1 // pred_check_branch
      %312 = sbr.rel (0) target = $region49
    $region48: #{tpu_custom_call.1} parent=1 // pred_region
      %s314 = ssub.s32 128, 128
      %315 = vsyncadd [#allocation10], %s314
      %s316 = sshll.u32 [#allocation9], 4
      %s317 = int_to_ptr.vmem [resolvable:$true] %s316
      %322 = dma.vmem_to_hbm [thread:$0]  %s317, 128, %s8, [#allocation10], 64, 64, 4
    $region49: #{tpu_custom_call.1} parent=1 // pred_fallthru
      _
    // Predicated region
    $region50: #{tpu_custom_call.1} parent=1 // pred_check
      _
    $region51: #{tpu_custom_call.1} parent=1 // pred_check_branch
      %324 = sbr.rel (0) target = $region53
    $region52: #{tpu_custom_call.1} parent=1 // pred_region
      %s326 = ssub.s32 128, 128
      %327 = vsyncadd [#allocation10], %s326
      %s328 = sshll.u32 [#allocation11], 4
      %s329 = int_to_ptr.vmem [resolvable:$true] %s328
      %334 = dma.vmem_to_hbm [thread:$0]  %s329, 128, %s9, [#allocation10], 64, 64, 4
    $region53: #{tpu_custom_call.1} parent=1 // pred_fallthru
      _
    // Predicated region
    $region54: #{tpu_custom_call.1} parent=1 // pred_check
      _
    $region55: #{tpu_custom_call.1} parent=1 // pred_check_branch
      %336 = sbr.rel (0) target = $region57
    $region56: #{tpu_custom_call.1} parent=1 // pred_region
      %337 = dma.done [#allocation4], 256
    $region57: #{tpu_custom_call.1} parent=1 // pred_fallthru
      _
    // Predicated region
    $region58: #{tpu_custom_call.1} parent=1 // pred_check
      _
    $region59: #{tpu_custom_call.1} parent=1 // pred_check_branch
      %339 = sbr.rel (0) target = $region61
    $region60: #{tpu_custom_call.1} parent=1 // pred_region
      %340 = dma.done [#allocation10], 128
    $region61: #{tpu_custom_call.1} parent=1 // pred_fallthru
      _
    // Predicated region
    $region62: #{tpu_custom_call.1} parent=1 // pred_check
      _
    $region63: #{tpu_custom_call.1} parent=1 // pred_check_branch
      %342 = sbr.rel (0) target = $region65
    $region64: #{tpu_custom_call.1} parent=1 // pred_region
      %343 = dma.done [#allocation10], 128
    $region65: #{tpu_custom_call.1} parent=1 // pred_fallthru
      _
    %344 = vsyncpa [#allocation3], 1
    %345 = vsyncpa [#allocation6], 1
    %346 = vsyncpa [#allocation4], 1
    %347 = vsyncpa [#allocation10], 1

</llo_original>
